<compile_context>
chip_gen: v7x
topology: tpu7x:2x2x1
jax: 0.10.0
libtpu: 0.0.40
codegen_flags: <defaults>
</compile_context>

<pallas_src>
import functools

import numpy as np
import jax
import jax.numpy as jnp
from jax import lax
from jax.experimental import pallas as pl
from jax.experimental.pallas import tpu as pltpu

# --- model hyper-parameters (small, consistent with the module ctor args) ---
N_CLASSES = 5
KER_SIZE = 7
N_KERS = 8
N1_NODES = 32
N2_NODES = 32
OUT_PAD = 128          # lane-dense fused-head output width: [q | d | zero pad]


def _round_up(x, m):
    return (x + m - 1) // m * m


def _next_pow2(n):
    return 1 << (n - 1).bit_length()


def cnniqa_kernel(x_ref, t_ref, p_ref, out_ref, *,
                  K, n1, n2, r_w1, r_b1, r_w2, r_b2, r_wh, r_bh, r_bc):
    """One grid step == one batch tile of TB images.

    x_ref:   (TB, H*W)          raw images, one lane-dense row per image
    t_ref:   (H*W, P_pad*K)     Toeplitz conv weights; column p*K + k holds the
                                kernel-k tap pattern for spatial output p
                                (padded p >= OH*OW replicate valid columns)
    p_ref:   (112, 128)         packed small params (fc1, fc2, fused head,
                                doubled conv bias) at static 8-aligned rows
    out_ref: (TB, 128)          lane-dense output slab (col 0 = q, 1..nc = d)
    """
    # --- conv1 as a single full-contraction Toeplitz matmul ------------------
    acc = jnp.dot(x_ref[...], t_ref[...],
                  preferred_element_type=jnp.float32)        # (TB, P_pad*K)

    # --- global max / min pooling over spatial positions ---------------------
    # Column layout is p*K + k with P_pad a power of two, so a lane-halving
    # tree (pairing p and p + span/2 for the same k) reduces to width K.
    r_max = acc
    r_min = acc
    while r_max.shape[1] > K:
        half = r_max.shape[1] // 2
        r_max = jnp.maximum(r_max[:, :half], r_max[:, half:])
        r_min = jnp.minimum(r_min[:, :half], r_min[:, half:])

    # feat = [max | min] + [bias | bias]  (bias commutes with max/min pooling)
    feat = jnp.concatenate([r_max, r_min], axis=1) + p_ref[r_bc:r_bc + 1, 0:2 * K]

    # --- batched FC chain over the whole tile --------------------------------
    w1 = p_ref[r_w1:r_w1 + 2 * K, 0:n1]
    b1 = p_ref[r_b1:r_b1 + 1, 0:n1]
    h = jnp.maximum(jnp.dot(feat, w1, preferred_element_type=jnp.float32) + b1, 0.0)
    # TODO(synk): F.dropout(h) (p=0.5, training mode in the functional form) is
    # stochastic; using inference-mode identity here for determinism.
    w2 = p_ref[r_w2:r_w2 + n1, 0:n2]
    b2 = p_ref[r_b2:r_b2 + 1, 0:n2]
    h = jnp.maximum(jnp.dot(h, w2, preferred_element_type=jnp.float32) + b2, 0.0)

    # Fused q/d heads: one matmul, one lane-dense (TB, 128) store.
    wh = p_ref[r_wh:r_wh + n2, :]
    bh = p_ref[r_bh:r_bh + 1, :]
    out = jnp.dot(h, wh, preferred_element_type=jnp.float32) + bh
    out_ref[...] = out.astype(out_ref.dtype)


@jax.jit
def cnniqa_forward(x, params):
    """x: (..., 1, H, W) float32 (NCHW, C == 1). params: PyTorch-shaped tensors.

    Returns (q, d) with shapes (B, 1) and (B, n_classes).
    """
    (conv_w, conv_b, fc1_w, fc1_b, fc2_w, fc2_b,
     fc3q_w, fc3q_b, fc3d_w, fc3d_b) = params

    H, W = x.shape[-2], x.shape[-1]
    x = x.reshape(-1, x.shape[-3], H, W)          # x.view(-1, C, H, W), C == 1
    B = x.shape[0]

    KH = KW = KER_SIZE
    OH, OW = H - KH + 1, W - KW + 1
    K, n1, n2, nc = N_KERS, N1_NODES, N2_NODES, N_CLASSES
    HW = H * W
    P = OH * OW
    # power of 2 -> lane-halving tree works; >=16 so P_pad*K is a 128 multiple
    P_pad = max(16, _next_pow2(P))
    PK = P_pad * K

    # ---- batch tile / grid sizing: minimize padding, keep nb >= 2 for v7x ---
    TB_MAX = 256
    nb = max(1, -(-B // TB_MAX))
    if nb == 1 and B > 8:
        nb = 2                                    # let v7x's 2 TCs each get work
    TB = _round_up(-(-B // nb), 8)
    nb = -(-B // TB)
    B_pad = nb * TB

    # ---- host-side Toeplitz conv packing (static index table, one gather) ---
    # toep[(iy*W+ix), p*K+k] = conv_w[k,0,iy-oy,ix-ox] when the tap is valid,
    # else 0; padded columns p >= P replicate column p % P (real values, so
    # they never perturb the max/min pooling).
    p_eff = np.arange(P_pad) % P
    oy = p_eff // OW
    ox = p_eff % OW
    dy = np.arange(KH)
    dx = np.arange(KW)
    rr = ((oy[None, None, :] + dy[:, None, None]) * W
          + (ox[None, None, :] + dx[None, :, None]))            # (KH, KW, P_pad)
    ww = np.broadcast_to((dy[:, None] * KW + dx[None, :])[:, :, None], rr.shape)
    pp = np.broadcast_to(np.arange(P_pad)[None, None, :], rr.shape)
    idx = np.full((HW, P_pad), KH * KW, np.int32)               # default -> zero row
    idx[rr.reshape(-1), pp.reshape(-1)] = ww.reshape(-1)

    w_flat = jnp.transpose(conv_w[:, 0].reshape(K, KH * KW))    # (KH*KW, K)
    w_ext = jnp.concatenate([w_flat.astype(jnp.float32),
                             jnp.zeros((1, K), jnp.float32)], axis=0)
    toep = w_ext[jnp.asarray(idx)].reshape(HW, PK)              # (HW, P_pad*K)

    # ---- pack all small params into one (rows, 128) slab --------------------
    def a8(v):
        return _round_up(v, 8)
    r_w1 = 0
    r_b1 = a8(r_w1 + 2 * K)
    r_w2 = a8(r_b1 + 1)
    r_b2 = a8(r_w2 + n1)
    r_wh = a8(r_b2 + 1)
    r_bh = a8(r_wh + n2)
    r_bc = a8(r_bh + 1)
    PROWS = a8(r_bc + 1)

    pslab = jnp.zeros((PROWS, OUT_PAD), jnp.float32)
    pslab = pslab.at[r_w1:r_w1 + 2 * K, 0:n1].set(fc1_w.T)
    pslab = pslab.at[r_b1, 0:n1].set(fc1_b)
    pslab = pslab.at[r_w2:r_w2 + n1, 0:n2].set(fc2_w.T)
    pslab = pslab.at[r_b2, 0:n2].set(fc2_b)
    pslab = pslab.at[r_wh:r_wh + n2, 0:1].set(fc3q_w.T)
    pslab = pslab.at[r_wh:r_wh + n2, 1:1 + nc].set(fc3d_w.T)
    pslab = pslab.at[r_bh, 0:1].set(fc3q_b)
    pslab = pslab.at[r_bh, 1:1 + nc].set(fc3d_b)
    pslab = pslab.at[r_bc, 0:K].set(conv_b)
    pslab = pslab.at[r_bc, K:2 * K].set(conv_b)

    # ---- input staging: (B, 1, H, W) -> (B_pad, H*W) lane-dense rows --------
    x2d = x.reshape(B, HW).astype(jnp.float32)
    if B_pad != B:
        x2d = jnp.concatenate(
            [x2d, jnp.zeros((B_pad - B, HW), jnp.float32)], axis=0)

    kernel = functools.partial(
        cnniqa_kernel, K=K, n1=n1, n2=n2,
        r_w1=r_w1, r_b1=r_b1, r_w2=r_w2, r_b2=r_b2,
        r_wh=r_wh, r_bh=r_bh, r_bc=r_bc)

    flops = (2 * B_pad * HW * PK
             + 2 * B_pad * (2 * K * n1 + n1 * n2 + n2 * OUT_PAD))
    bytes_accessed = 4 * (x2d.size + toep.size + pslab.size + B_pad * OUT_PAD)

    out = pl.pallas_call(
        kernel,
        out_shape=jax.ShapeDtypeStruct((B_pad, OUT_PAD), jnp.float32),
        grid=(nb,),
        in_specs=[
            pl.BlockSpec((TB, HW), lambda b: (b, 0)),           # image tile
            pl.BlockSpec((HW, PK), lambda b: (0, 0)),           # Toeplitz conv W
            pl.BlockSpec((PROWS, OUT_PAD), lambda b: (0, 0)),   # packed params
        ],
        out_specs=pl.BlockSpec((TB, OUT_PAD), lambda b: (b, 0)),
        compiler_params=pltpu.CompilerParams(
            dimension_semantics=("parallel",)),
        cost_estimate=pl.CostEstimate(flops=flops, transcendentals=0,
                                      bytes_accessed=bytes_accessed),
    )(x2d, toep, pslab)

    q = out[:B, 0:1]
    d = out[:B, 1:1 + nc]
    return q, d


def init_params(key):
    """Deterministic synthetic params in PyTorch layouts."""
    ks = jax.random.split(key, 10)
    k, K, n1, n2, nc = KER_SIZE, N_KERS, N1_NODES, N2_NODES, N_CLASSES
    conv_w = jax.random.normal(ks[0], (K, 1, k, k), jnp.float32) * 0.05
    conv_b = jax.random.normal(ks[1], (K,), jnp.float32) * 0.05
    fc1_w = jax.random.normal(ks[2], (n1, 2 * K), jnp.float32) * 0.05
    fc1_b = jax.random.normal(ks[3], (n1,), jnp.float32) * 0.05
    fc2_w = jax.random.normal(ks[4], (n2, n1), jnp.float32) * 0.05
    fc2_b = jax.random.normal(ks[5], (n2,), jnp.float32) * 0.05
    fc3q_w = jax.random.normal(ks[6], (1, n2), jnp.float32) * 0.05
    fc3q_b = jax.random.normal(ks[7], (1,), jnp.float32) * 0.05
    fc3d_w = jax.random.normal(ks[8], (nc, n2), jnp.float32) * 0.05
    fc3d_b = jax.random.normal(ks[9], (nc,), jnp.float32) * 0.05
    return (conv_w, conv_b, fc1_w, fc1_b, fc2_w, fc2_b,
            fc3q_w, fc3q_b, fc3d_w, fc3d_b)


def reference_forward(x, params):
    """Pure-JAX reference matching the PyTorch forward (dropout = identity)."""
    (conv_w, conv_b, fc1_w, fc1_b, fc2_w, fc2_b,
     fc3q_w, fc3q_b, fc3d_w, fc3d_b) = params
    x = x.reshape(-1, x.shape[-3], x.shape[-2], x.shape[-1])
    h = lax.conv_general_dilated(x, conv_w, (1, 1), 'VALID',
                                 dimension_numbers=('NCHW', 'OIHW', 'NCHW'),
                                 precision=lax.Precision.HIGHEST)
    h = h + conv_b.reshape(1, -1, 1, 1)
    h1 = jnp.max(h, axis=(2, 3))
    h2 = jnp.min(h, axis=(2, 3))          # -maxpool(-h)
    feat = jnp.concatenate([h1, h2], axis=1)
    h = jax.nn.relu(feat @ fc1_w.T + fc1_b)
    h = jax.nn.relu(h @ fc2_w.T + fc2_b)
    q = h @ fc3q_w.T + fc3q_b
    d = h @ fc3d_w.T + fc3d_b
    return q, d


if __name__ == "__main__":
    key = jax.random.PRNGKey(0)
    k_param, k_x1, k_x2 = jax.random.split(key, 3)
    params = init_params(k_param)

    # Small shape consistent with the module (NCHW, C = 1).
    x = jax.random.normal(k_x1, (2, 1, 16, 16), jnp.float32)
    q, d = jax.block_until_ready(cnniqa_forward(x, params))
    q_ref, d_ref = reference_forward(x, params)
    assert q.shape == (2, 1) and d.shape == (2, N_CLASSES)
    assert jnp.allclose(q, q_ref, atol=1e-3, rtol=1e-3)
    assert jnp.allclose(d, d_ref, atol=1e-3, rtol=1e-3)

    # Larger batch: exercises multi-step batch tiling + minimal batch padding.
    xb = jax.random.normal(k_x2, (200, 1, 16, 16), jnp.float32)
    qb, db = jax.block_until_ready(cnniqa_forward(xb, params))
    qb_ref, db_ref = reference_forward(xb, params)
    assert jnp.allclose(qb, qb_ref, atol=1e-3, rtol=1e-3)
    assert jnp.allclose(db, db_ref, atol=1e-3, rtol=1e-3)

    print("KERNEL_OK")
</pallas_src>

<mosaic_0001>
module attributes {stable_mosaic.version = 11 : i64} {
  func.func @cnniqa_kernel(%arg0: i32, %arg1: memref<8x256xf32, #tpu.memory_space<vmem>>, %arg2: memref<256x1024xf32, #tpu.memory_space<vmem>>, %arg3: memref<112x128xf32, #tpu.memory_space<vmem>>, %arg4: memref<8x128xf32, #tpu.memory_space<vmem>>) attributes {dimension_semantics = [#tpu.dimension_semantics<parallel>], iteration_bounds = array<i64: 1>, scalar_prefetch = 0 : i64, scratch_operands = 0 : i64, tpu.core_type = #tpu.core_type<tc>, window_params = [{transform_indices = @transform_0, window_bounds = array<i64: 8, 256>}, {pipeline_mode = #tpu.pipeline_mode<synchronous>, transform_indices = @transform_1, window_bounds = array<i64: 256, 1024>}, {pipeline_mode = #tpu.pipeline_mode<synchronous>, transform_indices = @transform_2, window_bounds = array<i64: 112, 128>}, {transform_indices = @transform_3, window_bounds = array<i64: 8, 128>}]} {
    %c0 = arith.constant 0 : index
    %c0_0 = arith.constant 0 : index
    %0 = vector.load %arg1[%c0, %c0_0] : memref<8x256xf32, #tpu.memory_space<vmem>>, vector<8x256xf32>
    %c0_1 = arith.constant 0 : index
    %c0_2 = arith.constant 0 : index
    %1 = vector.load %arg2[%c0_1, %c0_2] : memref<256x1024xf32, #tpu.memory_space<vmem>>, vector<256x1024xf32>
    %cst = arith.constant dense<0.000000e+00> : vector<8x1024xf32>
    %2 = tpu.matmul %0, %1, %cst {dimension_numbers = #tpu.dot_dimension_numbers<[1], [0], [0], [1], [0, 0, 1, 1], [], []>} : vector<8x256xf32>, vector<256x1024xf32>, vector<8x1024xf32> -> vector<8x1024xf32>
    %3 = vector.extract_strided_slice %2 {offsets = [0, 0], sizes = [8, 512], strides = [1, 1]} : vector<8x1024xf32> to vector<8x512xf32>
    %4 = vector.extract_strided_slice %2 {offsets = [0, 512], sizes = [8, 512], strides = [1, 1]} : vector<8x1024xf32> to vector<8x512xf32>
    %5 = arith.maximumf %3, %4 : vector<8x512xf32>
    %6 = vector.extract_strided_slice %2 {offsets = [0, 0], sizes = [8, 512], strides = [1, 1]} : vector<8x1024xf32> to vector<8x512xf32>
    %7 = vector.extract_strided_slice %2 {offsets = [0, 512], sizes = [8, 512], strides = [1, 1]} : vector<8x1024xf32> to vector<8x512xf32>
    %8 = arith.minimumf %6, %7 : vector<8x512xf32>
    %9 = vector.extract_strided_slice %5 {offsets = [0, 0], sizes = [8, 256], strides = [1, 1]} : vector<8x512xf32> to vector<8x256xf32>
    %10 = vector.extract_strided_slice %5 {offsets = [0, 256], sizes = [8, 256], strides = [1, 1]} : vector<8x512xf32> to vector<8x256xf32>
    %11 = arith.maximumf %9, %10 : vector<8x256xf32>
    %12 = vector.extract_strided_slice %8 {offsets = [0, 0], sizes = [8, 256], strides = [1, 1]} : vector<8x512xf32> to vector<8x256xf32>
    %13 = vector.extract_strided_slice %8 {offsets = [0, 256], sizes = [8, 256], strides = [1, 1]} : vector<8x512xf32> to vector<8x256xf32>
    %14 = arith.minimumf %12, %13 : vector<8x256xf32>
    %15 = vector.extract_strided_slice %11 {offsets = [0, 0], sizes = [8, 128], strides = [1, 1]} : vector<8x256xf32> to vector<8x128xf32>
    %16 = vector.extract_strided_slice %11 {offsets = [0, 128], sizes = [8, 128], strides = [1, 1]} : vector<8x256xf32> to vector<8x128xf32>
    %17 = arith.maximumf %15, %16 : vector<8x128xf32>
    %18 = vector.extract_strided_slice %14 {offsets = [0, 0], sizes = [8, 128], strides = [1, 1]} : vector<8x256xf32> to vector<8x128xf32>
    %19 = vector.extract_strided_slice %14 {offsets = [0, 128], sizes = [8, 128], strides = [1, 1]} : vector<8x256xf32> to vector<8x128xf32>
    %20 = arith.minimumf %18, %19 : vector<8x128xf32>
    %21 = vector.extract_strided_slice %17 {offsets = [0, 0], sizes = [8, 64], strides = [1, 1]} : vector<8x128xf32> to vector<8x64xf32>
    %22 = vector.extract_strided_slice %17 {offsets = [0, 64], sizes = [8, 64], strides = [1, 1]} : vector<8x128xf32> to vector<8x64xf32>
    %23 = arith.maximumf %21, %22 : vector<8x64xf32>
    %24 = vector.extract_strided_slice %20 {offsets = [0, 0], sizes = [8, 64], strides = [1, 1]} : vector<8x128xf32> to vector<8x64xf32>
    %25 = vector.extract_strided_slice %20 {offsets = [0, 64], sizes = [8, 64], strides = [1, 1]} : vector<8x128xf32> to vector<8x64xf32>
    %26 = arith.minimumf %24, %25 : vector<8x64xf32>
    %27 = vector.extract_strided_slice %23 {offsets = [0, 0], sizes = [8, 32], strides = [1, 1]} : vector<8x64xf32> to vector<8x32xf32>
    %28 = vector.extract_strided_slice %23 {offsets = [0, 32], sizes = [8, 32], strides = [1, 1]} : vector<8x64xf32> to vector<8x32xf32>
    %29 = arith.maximumf %27, %28 : vector<8x32xf32>
    %30 = vector.extract_strided_slice %26 {offsets = [0, 0], sizes = [8, 32], strides = [1, 1]} : vector<8x64xf32> to vector<8x32xf32>
    %31 = vector.extract_strided_slice %26 {offsets = [0, 32], sizes = [8, 32], strides = [1, 1]} : vector<8x64xf32> to vector<8x32xf32>
    %32 = arith.minimumf %30, %31 : vector<8x32xf32>
    %33 = vector.extract_strided_slice %29 {offsets = [0, 0], sizes = [8, 16], strides = [1, 1]} : vector<8x32xf32> to vector<8x16xf32>
    %34 = vector.extract_strided_slice %29 {offsets = [0, 16], sizes = [8, 16], strides = [1, 1]} : vector<8x32xf32> to vector<8x16xf32>
    %35 = arith.maximumf %33, %34 : vector<8x16xf32>
    %36 = vector.extract_strided_slice %32 {offsets = [0, 0], sizes = [8, 16], strides = [1, 1]} : vector<8x32xf32> to vector<8x16xf32>
    %37 = vector.extract_strided_slice %32 {offsets = [0, 16], sizes = [8, 16], strides = [1, 1]} : vector<8x32xf32> to vector<8x16xf32>
    %38 = arith.minimumf %36, %37 : vector<8x16xf32>
    %39 = vector.extract_strided_slice %35 {offsets = [0, 0], sizes = [8, 8], strides = [1, 1]} : vector<8x16xf32> to vector<8x8xf32>
    %40 = vector.extract_strided_slice %35 {offsets = [0, 8], sizes = [8, 8], strides = [1, 1]} : vector<8x16xf32> to vector<8x8xf32>
    %41 = arith.maximumf %39, %40 : vector<8x8xf32>
    %42 = vector.extract_strided_slice %38 {offsets = [0, 0], sizes = [8, 8], strides = [1, 1]} : vector<8x16xf32> to vector<8x8xf32>
    %43 = vector.extract_strided_slice %38 {offsets = [0, 8], sizes = [8, 8], strides = [1, 1]} : vector<8x16xf32> to vector<8x8xf32>
    %44 = arith.minimumf %42, %43 : vector<8x8xf32>
    %45 = tpu.concatenate %41, %44 in 1 : vector<8x8xf32>, vector<8x8xf32> -> vector<8x16xf32>
    %c104 = arith.constant 104 : index
    %c0_3 = arith.constant 0 : index
    %46 = vector.load %arg3[%c104, %c0_3] : memref<112x128xf32, #tpu.memory_space<vmem>>, vector<1x16xf32>
    %47 = vector.broadcast %46 : vector<1x16xf32> to vector<8x16xf32>
    %48 = arith.addf %45, %47 : vector<8x16xf32>
    %c0_4 = arith.constant 0 : index
    %c0_5 = arith.constant 0 : index
    %49 = vector.load %arg3[%c0_4, %c0_5] : memref<112x128xf32, #tpu.memory_space<vmem>>, vector<16x32xf32>
    %c16 = arith.constant 16 : index
    %c0_6 = arith.constant 0 : index
    %50 = vector.load %arg3[%c16, %c0_6] : memref<112x128xf32, #tpu.memory_space<vmem>>, vector<1x32xf32>
    %cst_7 = arith.constant dense<0.000000e+00> : vector<8x32xf32>
    %51 = tpu.matmul %48, %49, %cst_7 {dimension_numbers = #tpu.dot_dimension_numbers<[1], [0], [0], [1], [0, 0, 1, 1], [], []>} : vector<8x16xf32>, vector<16x32xf32>, vector<8x32xf32> -> vector<8x32xf32>
    %52 = vector.broadcast %50 : vector<1x32xf32> to vector<8x32xf32>
    %53 = arith.addf %51, %52 : vector<8x32xf32>
    %cst_8 = arith.constant 0.000000e+00 : f32
    %54 = vector.broadcast %cst_8 : f32 to vector<8x32xf32>
    %55 = arith.maximumf %53, %54 : vector<8x32xf32>
    %c24 = arith.constant 24 : index
    %c0_9 = arith.constant 0 : index
    %56 = vector.load %arg3[%c24, %c0_9] : memref<112x128xf32, #tpu.memory_space<vmem>>, vector<32x32xf32>
    %c56 = arith.constant 56 : index
    %c0_10 = arith.constant 0 : index
    %57 = vector.load %arg3[%c56, %c0_10] : memref<112x128xf32, #tpu.memory_space<vmem>>, vector<1x32xf32>
    %cst_11 = arith.constant dense<0.000000e+00> : vector<8x32xf32>
    %58 = tpu.matmul %55, %56, %cst_11 {dimension_numbers = #tpu.dot_dimension_numbers<[1], [0], [0], [1], [0, 0, 1, 1], [], []>} : vector<8x32xf32>, vector<32x32xf32>, vector<8x32xf32> -> vector<8x32xf32>
    %59 = vector.broadcast %57 : vector<1x32xf32> to vector<8x32xf32>
    %60 = arith.addf %58, %59 : vector<8x32xf32>
    %cst_12 = arith.constant 0.000000e+00 : f32
    %61 = vector.broadcast %cst_12 : f32 to vector<8x32xf32>
    %62 = arith.maximumf %60, %61 : vector<8x32xf32>
    %c64 = arith.constant 64 : index
    %c0_13 = arith.constant 0 : index
    %63 = vector.load %arg3[%c64, %c0_13] : memref<112x128xf32, #tpu.memory_space<vmem>>, vector<32x128xf32>
    %c96 = arith.constant 96 : index
    %c0_14 = arith.constant 0 : index
    %64 = vector.load %arg3[%c96, %c0_14] : memref<112x128xf32, #tpu.memory_space<vmem>>, vector<1x128xf32>
    %cst_15 = arith.constant dense<0.000000e+00> : vector<8x128xf32>
    %65 = tpu.matmul %62, %63, %cst_15 {dimension_numbers = #tpu.dot_dimension_numbers<[1], [0], [0], [1], [0, 0, 1, 1], [], []>} : vector<8x32xf32>, vector<32x128xf32>, vector<8x128xf32> -> vector<8x128xf32>
    %66 = vector.broadcast %64 : vector<1x128xf32> to vector<8x128xf32>
    %67 = arith.addf %65, %66 : vector<8x128xf32>
    %c0_16 = arith.constant 0 : index
    %c0_17 = arith.constant 0 : index
    %68 = vector.load %arg4[%c0_16, %c0_17] : memref<8x128xf32, #tpu.memory_space<vmem>>, vector<8x128xf32>
    tpu.vector_store %arg4[%c0_16, %c0_17], %67 {strides = array<i32>} : memref<8x128xf32, #tpu.memory_space<vmem>>, vector<8x128xf32>,
    return
  }
  func.func @transform_0(%arg0: i32) -> (i32, i32) {
    %c0_i32 = arith.constant 0 : i32
    %c0_i32_0 = arith.constant 0 : i32
    return %arg0, %c0_i32 : i32, i32
  }
  func.func @transform_1(%arg0: i32) -> (i32, i32) {
    %c0_i32 = arith.constant 0 : i32
    %c0_i32_0 = arith.constant 0 : i32
    %c0_i32_1 = arith.constant 0 : i32
    return %c0_i32, %c0_i32_0 : i32, i32
  }
  func.func @transform_2(%arg0: i32) -> (i32, i32) {
    %c0_i32 = arith.constant 0 : i32
    %c0_i32_0 = arith.constant 0 : i32
    %c0_i32_1 = arith.constant 0 : i32
    return %c0_i32, %c0_i32_0 : i32, i32
  }
  func.func @transform_3(%arg0: i32) -> (i32, i32) {
    %c0_i32 = arith.constant 0 : i32
    %c0_i32_0 = arith.constant 0 : i32
    return %arg0, %c0_i32 : i32, i32
  }
}

</mosaic_0001>

<llo_original>
// kernel: cnniqa_forward.1
$region0: #{cnniqa_forward.1}
  #allocation0 [shape = 'u32[]', space=smem, size = 0x4, offset = 0x4, fixed_abs, tag = 'smem constant byte address 0x4 - core index']
  #allocation1 [shape = 'u32[144,128]{1,0:T(1,128)}', space=vmem, size = 0x12000, scoped, tag = 'internal scratch']
  %s0 = inlined_call_operand.vmem [shape: f32[8,256], index: 0, kind: input, shape index: {}]
  %s1 = inlined_call_operand.vmem [shape: f32[256,1024], index: 1, kind: input, shape index: {}]
  %s2 = inlined_call_operand.vmem [shape: f32[112,128], index: 2, kind: input, shape index: {}]
  %s3 = inlined_call_operand.vmem [shape: f32[8,128], index: 3, kind: output, shape index: {}]
  %s4 = sld [smem:[#allocation0]]
  $region22: #{cnniqa_forward.1} parent=0
    _
  %s6 = ssub.s32 1, %s4
  %s7 = scalar_select 0, %s6, %s4
  // Predicated region
  $region2: #{cnniqa_forward.1} parent=0 // pred_check
    _
  $region3: #{cnniqa_forward.1} parent=0 // pred_check_branch
    %9 = sbr.rel (0) target = $region5
  $region4: #{cnniqa_forward.1} parent=0 // pred_region
    _
  $region5: #{cnniqa_forward.1} parent=0 // pred_fallthru
    _
  // Predicated region
  $region6: #{cnniqa_forward.1} parent=0 // pred_check
    _
  $region7: #{cnniqa_forward.1} parent=0 // pred_check_branch
    %11 = sbr.rel (0) target = $region9
  $region8: #{cnniqa_forward.1} parent=0 // pred_region
    _
  $region9: #{cnniqa_forward.1} parent=0 // pred_fallthru
    _
  // Predicated region
  $region10: #{cnniqa_forward.1} parent=0 // pred_check
    _
  $region11: #{cnniqa_forward.1} parent=0 // pred_check_branch
    %13 = sbr.rel (0) target = $region13
  $region12: #{cnniqa_forward.1} parent=0 // pred_region
    _
  $region13: #{cnniqa_forward.1} parent=0 // pred_fallthru
    _
  %v14 = vld [vmem:[%s0] sm:$0xff]
  %v15 = vld [vmem:[%s0 + $0x8] sm:$0xff]
  %v16 = vld [vmem:[%s1] sm:$0xff]
  %v17 = vld [vmem:[%s1 + $0x8] sm:$0xff]
  %v18 = vld [vmem:[%s1 + $0x10] sm:$0xff]
  %v19 = vld [vmem:[%s1 + $0x18] sm:$0xff]
  %v20 = vld [vmem:[%s1 + $0x20] sm:$0xff]
  %v21 = vld [vmem:[%s1 + $0x28] sm:$0xff]
  %v22 = vld [vmem:[%s1 + $0x30] sm:$0xff]
  %v23 = vld [vmem:[%s1 + $0x38] sm:$0xff]
  %v24 = vld [vmem:[%s1 + $0x40] sm:$0xff]
  %v25 = vld [vmem:[%s1 + $0x48] sm:$0xff]
  %v26 = vld [vmem:[%s1 + $0x50] sm:$0xff]
  %v27 = vld [vmem:[%s1 + $0x58] sm:$0xff]
  %v28 = vld [vmem:[%s1 + $0x60] sm:$0xff]
  %v29 = vld [vmem:[%s1 + $0x68] sm:$0xff]
  %v30 = vld [vmem:[%s1 + $0x70] sm:$0xff]
  %v31 = vld [vmem:[%s1 + $0x78] sm:$0xff]
  %v32 = vld [vmem:[%s1 + $0x80] sm:$0xff]
  %v33 = vld [vmem:[%s1 + $0x88] sm:$0xff]
  %v34 = vld [vmem:[%s1 + $0x90] sm:$0xff]
  %v35 = vld [vmem:[%s1 + $0x98] sm:$0xff]
  %v36 = vld [vmem:[%s1 + $0xa0] sm:$0xff]
  %v37 = vld [vmem:[%s1 + $0xa8] sm:$0xff]
  %v38 = vld [vmem:[%s1 + $0xb0] sm:$0xff]
  %v39 = vld [vmem:[%s1 + $0xb8] sm:$0xff]
  %v40 = vld [vmem:[%s1 + $0xc0] sm:$0xff]
  %v41 = vld [vmem:[%s1 + $0xc8] sm:$0xff]
  %v42 = vld [vmem:[%s1 + $0xd0] sm:$0xff]
  %v43 = vld [vmem:[%s1 + $0xd8] sm:$0xff]
  %v44 = vld [vmem:[%s1 + $0xe0] sm:$0xff]
  %v45 = vld [vmem:[%s1 + $0xe8] sm:$0xff]
  %v46 = vld [vmem:[%s1 + $0xf0] sm:$0xff]
  %v47 = vld [vmem:[%s1 + $0xf8] sm:$0xff]
  %v48 = vld [vmem:[%s1 + $0x100] sm:$0xff]
  %v49 = vld [vmem:[%s1 + $0x108] sm:$0xff]
  %v50 = vld [vmem:[%s1 + $0x110] sm:$0xff]
  %v51 = vld [vmem:[%s1 + $0x118] sm:$0xff]
  %v52 = vld [vmem:[%s1 + $0x120] sm:$0xff]
  %v53 = vld [vmem:[%s1 + $0x128] sm:$0xff]
  %v54 = vld [vmem:[%s1 + $0x130] sm:$0xff]
  %v55 = vld [vmem:[%s1 + $0x138] sm:$0xff]
  %v56 = vld [vmem:[%s1 + $0x140] sm:$0xff]
  %v57 = vld [vmem:[%s1 + $0x148] sm:$0xff]
  %v58 = vld [vmem:[%s1 + $0x150] sm:$0xff]
  %v59 = vld [vmem:[%s1 + $0x158] sm:$0xff]
  %v60 = vld [vmem:[%s1 + $0x160] sm:$0xff]
  %v61 = vld [vmem:[%s1 + $0x168] sm:$0xff]
  %v62 = vld [vmem:[%s1 + $0x170] sm:$0xff]
  %v63 = vld [vmem:[%s1 + $0x178] sm:$0xff]
  %v64 = vld [vmem:[%s1 + $0x180] sm:$0xff]
  %v65 = vld [vmem:[%s1 + $0x188] sm:$0xff]
  %v66 = vld [vmem:[%s1 + $0x190] sm:$0xff]
  %v67 = vld [vmem:[%s1 + $0x198] sm:$0xff]
  %v68 = vld [vmem:[%s1 + $0x1a0] sm:$0xff]
  %v69 = vld [vmem:[%s1 + $0x1a8] sm:$0xff]
  %v70 = vld [vmem:[%s1 + $0x1b0] sm:$0xff]
  %v71 = vld [vmem:[%s1 + $0x1b8] sm:$0xff]
  %v72 = vld [vmem:[%s1 + $0x1c0] sm:$0xff]
  %v73 = vld [vmem:[%s1 + $0x1c8] sm:$0xff]
  %v74 = vld [vmem:[%s1 + $0x1d0] sm:$0xff]
  %v75 = vld [vmem:[%s1 + $0x1d8] sm:$0xff]
  %v76 = vld [vmem:[%s1 + $0x1e0] sm:$0xff]
  %v77 = vld [vmem:[%s1 + $0x1e8] sm:$0xff]
  %v78 = vld [vmem:[%s1 + $0x1f0] sm:$0xff]
  %v79 = vld [vmem:[%s1 + $0x1f8] sm:$0xff]
  %v80 = vld [vmem:[%s1 + $0x200] sm:$0xff]
  %v81 = vld [vmem:[%s1 + $0x208] sm:$0xff]
  %v82 = vld [vmem:[%s1 + $0x210] sm:$0xff]
  %v83 = vld [vmem:[%s1 + $0x218] sm:$0xff]
  %v84 = vld [vmem:[%s1 + $0x220] sm:$0xff]
  %v85 = vld [vmem:[%s1 + $0x228] sm:$0xff]
  %v86 = vld [vmem:[%s1 + $0x230] sm:$0xff]
  %v87 = vld [vmem:[%s1 + $0x238] sm:$0xff]
  %v88 = vld [vmem:[%s1 + $0x240] sm:$0xff]
  %v89 = vld [vmem:[%s1 + $0x248] sm:$0xff]
  %v90 = vld [vmem:[%s1 + $0x250] sm:$0xff]
  %v91 = vld [vmem:[%s1 + $0x258] sm:$0xff]
  %v92 = vld [vmem:[%s1 + $0x260] sm:$0xff]
  %v93 = vld [vmem:[%s1 + $0x268] sm:$0xff]
  %v94 = vld [vmem:[%s1 + $0x270] sm:$0xff]
  %v95 = vld [vmem:[%s1 + $0x278] sm:$0xff]
  %v96 = vld [vmem:[%s1 + $0x280] sm:$0xff]
  %v97 = vld [vmem:[%s1 + $0x288] sm:$0xff]
  %v98 = vld [vmem:[%s1 + $0x290] sm:$0xff]
  %v99 = vld [vmem:[%s1 + $0x298] sm:$0xff]
  %v100 = vld [vmem:[%s1 + $0x2a0] sm:$0xff]
  %v101 = vld [vmem:[%s1 + $0x2a8] sm:$0xff]
  %v102 = vld [vmem:[%s1 + $0x2b0] sm:$0xff]
  %v103 = vld [vmem:[%s1 + $0x2b8] sm:$0xff]
  %v104 = vld [vmem:[%s1 + $0x2c0] sm:$0xff]
  %v105 = vld [vmem:[%s1 + $0x2c8] sm:$0xff]
  %v106 = vld [vmem:[%s1 + $0x2d0] sm:$0xff]
  %v107 = vld [vmem:[%s1 + $0x2d8] sm:$0xff]
  %v108 = vld [vmem:[%s1 + $0x2e0] sm:$0xff]
  %v109 = vld [vmem:[%s1 + $0x2e8] sm:$0xff]
  %v110 = vld [vmem:[%s1 + $0x2f0] sm:$0xff]
  %v111 = vld [vmem:[%s1 + $0x2f8] sm:$0xff]
  %v112 = vld [vmem:[%s1 + $0x300] sm:$0xff]
  %v113 = vld [vmem:[%s1 + $0x308] sm:$0xff]
  %v114 = vld [vmem:[%s1 + $0x310] sm:$0xff]
  %v115 = vld [vmem:[%s1 + $0x318] sm:$0xff]
  %v116 = vld [vmem:[%s1 + $0x320] sm:$0xff]
  %v117 = vld [vmem:[%s1 + $0x328] sm:$0xff]
  %v118 = vld [vmem:[%s1 + $0x330] sm:$0xff]
  %v119 = vld [vmem:[%s1 + $0x338] sm:$0xff]
  %v120 = vld [vmem:[%s1 + $0x340] sm:$0xff]
  %v121 = vld [vmem:[%s1 + $0x348] sm:$0xff]
  %v122 = vld [vmem:[%s1 + $0x350] sm:$0xff]
  %v123 = vld [vmem:[%s1 + $0x358] sm:$0xff]
  %v124 = vld [vmem:[%s1 + $0x360] sm:$0xff]
  %v125 = vld [vmem:[%s1 + $0x368] sm:$0xff]
  %v126 = vld [vmem:[%s1 + $0x370] sm:$0xff]
  %v127 = vld [vmem:[%s1 + $0x378] sm:$0xff]
  %v128 = vld [vmem:[%s1 + $0x380] sm:$0xff]
  %v129 = vld [vmem:[%s1 + $0x388] sm:$0xff]
  %v130 = vld [vmem:[%s1 + $0x390] sm:$0xff]
  %v131 = vld [vmem:[%s1 + $0x398] sm:$0xff]
  %v132 = vld [vmem:[%s1 + $0x3a0] sm:$0xff]
  %v133 = vld [vmem:[%s1 + $0x3a8] sm:$0xff]
  %v134 = vld [vmem:[%s1 + $0x3b0] sm:$0xff]
  %v135 = vld [vmem:[%s1 + $0x3b8] sm:$0xff]
  %v136 = vld [vmem:[%s1 + $0x3c0] sm:$0xff]
  %v137 = vld [vmem:[%s1 + $0x3c8] sm:$0xff]
  %v138 = vld [vmem:[%s1 + $0x3d0] sm:$0xff]
  %v139 = vld [vmem:[%s1 + $0x3d8] sm:$0xff]
  %v140 = vld [vmem:[%s1 + $0x3e0] sm:$0xff]
  %v141 = vld [vmem:[%s1 + $0x3e8] sm:$0xff]
  %v142 = vld [vmem:[%s1 + $0x3f0] sm:$0xff]
  %v143 = vld [vmem:[%s1 + $0x3f8] sm:$0xff]
  %v144 = vld [vmem:[%s1 + $0x400] sm:$0xff]
  %v145 = vld [vmem:[%s1 + $0x408] sm:$0xff]
  %v146 = vld [vmem:[%s1 + $0x410] sm:$0xff]
  %v147 = vld [vmem:[%s1 + $0x418] sm:$0xff]
  %v148 = vld [vmem:[%s1 + $0x420] sm:$0xff]
  %v149 = vld [vmem:[%s1 + $0x428] sm:$0xff]
  %v150 = vld [vmem:[%s1 + $0x430] sm:$0xff]
  %v151 = vld [vmem:[%s1 + $0x438] sm:$0xff]
  %v152 = vld [vmem:[%s1 + $0x440] sm:$0xff]
  %v153 = vld [vmem:[%s1 + $0x448] sm:$0xff]
  %v154 = vld [vmem:[%s1 + $0x450] sm:$0xff]
  %v155 = vld [vmem:[%s1 + $0x458] sm:$0xff]
  %v156 = vld [vmem:[%s1 + $0x460] sm:$0xff]
  %v157 = vld [vmem:[%s1 + $0x468] sm:$0xff]
  %v158 = vld [vmem:[%s1 + $0x470] sm:$0xff]
  %v159 = vld [vmem:[%s1 + $0x478] sm:$0xff]
  %v160 = vld [vmem:[%s1 + $0x480] sm:$0xff]
  %v161 = vld [vmem:[%s1 + $0x488] sm:$0xff]
  %v162 = vld [vmem:[%s1 + $0x490] sm:$0xff]
  %v163 = vld [vmem:[%s1 + $0x498] sm:$0xff]
  %v164 = vld [vmem:[%s1 + $0x4a0] sm:$0xff]
  %v165 = vld [vmem:[%s1 + $0x4a8] sm:$0xff]
  %v166 = vld [vmem:[%s1 + $0x4b0] sm:$0xff]
  %v167 = vld [vmem:[%s1 + $0x4b8] sm:$0xff]
  %v168 = vld [vmem:[%s1 + $0x4c0] sm:$0xff]
  %v169 = vld [vmem:[%s1 + $0x4c8] sm:$0xff]
  %v170 = vld [vmem:[%s1 + $0x4d0] sm:$0xff]
  %v171 = vld [vmem:[%s1 + $0x4d8] sm:$0xff]
  %v172 = vld [vmem:[%s1 + $0x4e0] sm:$0xff]
  %v173 = vld [vmem:[%s1 + $0x4e8] sm:$0xff]
  %v174 = vld [vmem:[%s1 + $0x4f0] sm:$0xff]
  %v175 = vld [vmem:[%s1 + $0x4f8] sm:$0xff]
  %v176 = vld [vmem:[%s1 + $0x500] sm:$0xff]
  %v177 = vld [vmem:[%s1 + $0x508] sm:$0xff]
  %v178 = vld [vmem:[%s1 + $0x510] sm:$0xff]
  %v179 = vld [vmem:[%s1 + $0x518] sm:$0xff]
  %v180 = vld [vmem:[%s1 + $0x520] sm:$0xff]
  %v181 = vld [vmem:[%s1 + $0x528] sm:$0xff]
  %v182 = vld [vmem:[%s1 + $0x530] sm:$0xff]
  %v183 = vld [vmem:[%s1 + $0x538] sm:$0xff]
  %v184 = vld [vmem:[%s1 + $0x540] sm:$0xff]
  %v185 = vld [vmem:[%s1 + $0x548] sm:$0xff]
  %v186 = vld [vmem:[%s1 + $0x550] sm:$0xff]
  %v187 = vld [vmem:[%s1 + $0x558] sm:$0xff]
  %v188 = vld [vmem:[%s1 + $0x560] sm:$0xff]
  %v189 = vld [vmem:[%s1 + $0x568] sm:$0xff]
  %v190 = vld [vmem:[%s1 + $0x570] sm:$0xff]
  %v191 = vld [vmem:[%s1 + $0x578] sm:$0xff]
  %v192 = vld [vmem:[%s1 + $0x580] sm:$0xff]
  %v193 = vld [vmem:[%s1 + $0x588] sm:$0xff]
  %v194 = vld [vmem:[%s1 + $0x590] sm:$0xff]
  %v195 = vld [vmem:[%s1 + $0x598] sm:$0xff]
  %v196 = vld [vmem:[%s1 + $0x5a0] sm:$0xff]
  %v197 = vld [vmem:[%s1 + $0x5a8] sm:$0xff]
  %v198 = vld [vmem:[%s1 + $0x5b0] sm:$0xff]
  %v199 = vld [vmem:[%s1 + $0x5b8] sm:$0xff]
  %v200 = vld [vmem:[%s1 + $0x5c0] sm:$0xff]
  %v201 = vld [vmem:[%s1 + $0x5c8] sm:$0xff]
  %v202 = vld [vmem:[%s1 + $0x5d0] sm:$0xff]
  %v203 = vld [vmem:[%s1 + $0x5d8] sm:$0xff]
  %v204 = vld [vmem:[%s1 + $0x5e0] sm:$0xff]
  %v205 = vld [vmem:[%s1 + $0x5e8] sm:$0xff]
  %v206 = vld [vmem:[%s1 + $0x5f0] sm:$0xff]
  %v207 = vld [vmem:[%s1 + $0x5f8] sm:$0xff]
  %v208 = vld [vmem:[%s1 + $0x600] sm:$0xff]
  %v209 = vld [vmem:[%s1 + $0x608] sm:$0xff]
  %v210 = vld [vmem:[%s1 + $0x610] sm:$0xff]
  %v211 = vld [vmem:[%s1 + $0x618] sm:$0xff]
  %v212 = vld [vmem:[%s1 + $0x620] sm:$0xff]
  %v213 = vld [vmem:[%s1 + $0x628] sm:$0xff]
  %v214 = vld [vmem:[%s1 + $0x630] sm:$0xff]
  %v215 = vld [vmem:[%s1 + $0x638] sm:$0xff]
  %v216 = vld [vmem:[%s1 + $0x640] sm:$0xff]
  %v217 = vld [vmem:[%s1 + $0x648] sm:$0xff]
  %v218 = vld [vmem:[%s1 + $0x650] sm:$0xff]
  %v219 = vld [vmem:[%s1 + $0x658] sm:$0xff]
  %v220 = vld [vmem:[%s1 + $0x660] sm:$0xff]
  %v221 = vld [vmem:[%s1 + $0x668] sm:$0xff]
  %v222 = vld [vmem:[%s1 + $0x670] sm:$0xff]
  %v223 = vld [vmem:[%s1 + $0x678] sm:$0xff]
  %v224 = vld [vmem:[%s1 + $0x680] sm:$0xff]
  %v225 = vld [vmem:[%s1 + $0x688] sm:$0xff]
  %v226 = vld [vmem:[%s1 + $0x690] sm:$0xff]
  %v227 = vld [vmem:[%s1 + $0x698] sm:$0xff]
  %v228 = vld [vmem:[%s1 + $0x6a0] sm:$0xff]
  %v229 = vld [vmem:[%s1 + $0x6a8] sm:$0xff]
  %v230 = vld [vmem:[%s1 + $0x6b0] sm:$0xff]
  %v231 = vld [vmem:[%s1 + $0x6b8] sm:$0xff]
  %v232 = vld [vmem:[%s1 + $0x6c0] sm:$0xff]
  %v233 = vld [vmem:[%s1 + $0x6c8] sm:$0xff]
  %v234 = vld [vmem:[%s1 + $0x6d0] sm:$0xff]
  %v235 = vld [vmem:[%s1 + $0x6d8] sm:$0xff]
  %v236 = vld [vmem:[%s1 + $0x6e0] sm:$0xff]
  %v237 = vld [vmem:[%s1 + $0x6e8] sm:$0xff]
  %v238 = vld [vmem:[%s1 + $0x6f0] sm:$0xff]
  %v239 = vld [vmem:[%s1 + $0x6f8] sm:$0xff]
  %v240 = vld [vmem:[%s1 + $0x700] sm:$0xff]
  %v241 = vld [vmem:[%s1 + $0x708] sm:$0xff]
  %v242 = vld [vmem:[%s1 + $0x710] sm:$0xff]
  %v243 = vld [vmem:[%s1 + $0x718] sm:$0xff]
  %v244 = vld [vmem:[%s1 + $0x720] sm:$0xff]
  %v245 = vld [vmem:[%s1 + $0x728] sm:$0xff]
  %v246 = vld [vmem:[%s1 + $0x730] sm:$0xff]
  %v247 = vld [vmem:[%s1 + $0x738] sm:$0xff]
  %v248 = vld [vmem:[%s1 + $0x740] sm:$0xff]
  %v249 = vld [vmem:[%s1 + $0x748] sm:$0xff]
  %v250 = vld [vmem:[%s1 + $0x750] sm:$0xff]
  %v251 = vld [vmem:[%s1 + $0x758] sm:$0xff]
  %v252 = vld [vmem:[%s1 + $0x760] sm:$0xff]
  %v253 = vld [vmem:[%s1 + $0x768] sm:$0xff]
  %v254 = vld [vmem:[%s1 + $0x770] sm:$0xff]
  %v255 = vld [vmem:[%s1 + $0x778] sm:$0xff]
  %v256 = vld [vmem:[%s1 + $0x780] sm:$0xff]
  %v257 = vld [vmem:[%s1 + $0x788] sm:$0xff]
  %v258 = vld [vmem:[%s1 + $0x790] sm:$0xff]
  %v259 = vld [vmem:[%s1 + $0x798] sm:$0xff]
  %v260 = vld [vmem:[%s1 + $0x7a0] sm:$0xff]
  %v261 = vld [vmem:[%s1 + $0x7a8] sm:$0xff]
  %v262 = vld [vmem:[%s1 + $0x7b0] sm:$0xff]
  %v263 = vld [vmem:[%s1 + $0x7b8] sm:$0xff]
  %v264 = vld [vmem:[%s1 + $0x7c0] sm:$0xff]
  %v265 = vld [vmem:[%s1 + $0x7c8] sm:$0xff]
  %v266 = vld [vmem:[%s1 + $0x7d0] sm:$0xff]
  %v267 = vld [vmem:[%s1 + $0x7d8] sm:$0xff]
  %v268 = vld [vmem:[%s1 + $0x7e0] sm:$0xff]
  %v269 = vld [vmem:[%s1 + $0x7e8] sm:$0xff]
  %v270 = vld [vmem:[%s1 + $0x7f0] sm:$0xff]
  %v271 = vld [vmem:[%s1 + $0x7f8] sm:$0xff]
  %272 = vmatprep.subr.mxu0 %v17
  %273 = vmatpush1.msra.mxu0 %v16
  %274 = vmatprep.subr.mxu0 %v25
  %275 = vmatpush1.msra.mxu0 %v24
  %276 = vmatprep.subr.mxu0 %v33
  %277 = vmatpush1.msra.mxu0 %v32
  %278 = vmatprep.subr.mxu0 %v41
  %279 = vmatpush1.msra.mxu0 %v40
  %280 = vmatprep.subr.mxu0 %v49
  %281 = vmatpush1.msra.mxu0 %v48
  %282 = vmatprep.subr.mxu0 %v57
  %283 = vmatpush1.msra.mxu0 %v56
  %284 = vmatprep.subr.mxu0 %v65
  %285 = vmatpush1.msra.mxu0 %v64
  %286 = vmatprep.subr.mxu0 %v73
  %287 = vmatpush1.msra.mxu0 %v72
  %288 = vmatprep.subr.mxu0 %v81
  %289 = vmatpush1.msra.mxu0 %v80
  %290 = vmatprep.subr.mxu0 %v89
  %291 = vmatpush1.msra.mxu0 %v88
  %292 = vmatprep.subr.mxu0 %v97
  %293 = vmatpush1.msra.mxu0 %v96
  %294 = vmatprep.subr.mxu0 %v105
  %295 = vmatpush1.msra.mxu0 %v104
  %296 = vmatprep.subr.mxu0 %v113
  %297 = vmatpush1.msra.mxu0 %v112
  %298 = vmatprep.subr.mxu0 %v121
  %299 = vmatpush1.msra.mxu0 %v120
  %300 = vmatprep.subr.mxu0 %v129
  %301 = vmatpush1.msra.mxu0 %v128
  %302 = vmatprep.subr.mxu0 %v137
  %303 = vmatpush1.msra.mxu0 %v136
  %304 = vmatprep.subr.mxu0 %v145
  %305 = vmatpush1.msra.mxu0 %v144
  %306 = vmatprep.subr.mxu0 %v153
  %307 = vmatpush1.msra.mxu0 %v152
  %308 = vmatprep.subr.mxu0 %v161
  %309 = vmatpush1.msra.mxu0 %v160
  %310 = vmatprep.subr.mxu0 %v169
  %311 = vmatpush1.msra.mxu0 %v168
  %312 = vmatprep.subr.mxu0 %v177
  %313 = vmatpush1.msra.mxu0 %v176
  %314 = vmatprep.subr.mxu0 %v185
  %315 = vmatpush1.msra.mxu0 %v184
  %316 = vmatprep.subr.mxu0 %v193
  %317 = vmatpush1.msra.mxu0 %v192
  %318 = vmatprep.subr.mxu0 %v201
  %319 = vmatpush1.msra.mxu0 %v200
  %320 = vmatprep.subr.mxu0 %v209
  %321 = vmatpush1.msra.mxu0 %v208
  %322 = vmatprep.subr.mxu0 %v217
  %323 = vmatpush1.msra.mxu0 %v216
  %324 = vmatprep.subr.mxu0 %v225
  %325 = vmatpush1.msra.mxu0 %v224
  %326 = vmatprep.subr.mxu0 %v233
  %327 = vmatpush1.msra.mxu0 %v232
  %328 = vmatprep.subr.mxu0 %v241
  %329 = vmatpush1.msra.mxu0 %v240
  %330 = vmatprep.subr.mxu0 %v249
  %331 = vmatpush1.msra.mxu0 %v248
  %332 = vmatprep.subr.mxu0 %v257
  %333 = vmatpush1.msra.mxu0 %v256
  %334 = vmatprep.subr.mxu0 %v265
  %335 = vmatpush1.msra.mxu0 %v264
  %336 = vmatprep.mubr.f32.mxu0 %v15
  %337 = vmatmul.mubr.f32.gmra.mrb[0].mxu0 %v14
  %v338 = vpop.f32.mrb[0].mxu0
  %v339 = vadd.f32 0.0, %v338
  %v340 = vpop.f32.mrb[0].mxu0
  %v341 = vadd.f32 0.0, %v340
  %342 = vdwg.mxu0
  %343 = vmatprep.subr.mxu0 %v19
  %344 = vmatpush1.msra.mxu0 %v18
  %345 = vmatprep.subr.mxu0 %v27
  %346 = vmatpush1.msra.mxu0 %v26
  %347 = vmatprep.subr.mxu0 %v35
  %348 = vmatpush1.msra.mxu0 %v34
  %349 = vmatprep.subr.mxu0 %v43
  %350 = vmatpush1.msra.mxu0 %v42
  %351 = vmatprep.subr.mxu0 %v51
  %352 = vmatpush1.msra.mxu0 %v50
  %353 = vmatprep.subr.mxu0 %v59
  %354 = vmatpush1.msra.mxu0 %v58
  %355 = vmatprep.subr.mxu0 %v67
  %356 = vmatpush1.msra.mxu0 %v66
  %357 = vmatprep.subr.mxu0 %v75
  %358 = vmatpush1.msra.mxu0 %v74
  %359 = vmatprep.subr.mxu0 %v83
  %360 = vmatpush1.msra.mxu0 %v82
  %361 = vmatprep.subr.mxu0 %v91
  %362 = vmatpush1.msra.mxu0 %v90
  %363 = vmatprep.subr.mxu0 %v99
  %364 = vmatpush1.msra.mxu0 %v98
  %365 = vmatprep.subr.mxu0 %v107
  %366 = vmatpush1.msra.mxu0 %v106
  %367 = vmatprep.subr.mxu0 %v115
  %368 = vmatpush1.msra.mxu0 %v114
  %369 = vmatprep.subr.mxu0 %v123
  %370 = vmatpush1.msra.mxu0 %v122
  %371 = vmatprep.subr.mxu0 %v131
  %372 = vmatpush1.msra.mxu0 %v130
  %373 = vmatprep.subr.mxu0 %v139
  %374 = vmatpush1.msra.mxu0 %v138
  %375 = vmatprep.subr.mxu0 %v147
  %376 = vmatpush1.msra.mxu0 %v146
  %377 = vmatprep.subr.mxu0 %v155
  %378 = vmatpush1.msra.mxu0 %v154
  %379 = vmatprep.subr.mxu0 %v163
  %380 = vmatpush1.msra.mxu0 %v162
  %381 = vmatprep.subr.mxu0 %v171
  %382 = vmatpush1.msra.mxu0 %v170
  %383 = vmatprep.subr.mxu0 %v179
  %384 = vmatpush1.msra.mxu0 %v178
  %385 = vmatprep.subr.mxu0 %v187
  %386 = vmatpush1.msra.mxu0 %v186
  %387 = vmatprep.subr.mxu0 %v195
  %388 = vmatpush1.msra.mxu0 %v194
  %389 = vmatprep.subr.mxu0 %v203
  %390 = vmatpush1.msra.mxu0 %v202
  %391 = vmatprep.subr.mxu0 %v211
  %392 = vmatpush1.msra.mxu0 %v210
  %393 = vmatprep.subr.mxu0 %v219
  %394 = vmatpush1.msra.mxu0 %v218
  %395 = vmatprep.subr.mxu0 %v227
  %396 = vmatpush1.msra.mxu0 %v226
  %397 = vmatprep.subr.mxu0 %v235
  %398 = vmatpush1.msra.mxu0 %v234
  %399 = vmatprep.subr.mxu0 %v243
  %400 = vmatpush1.msra.mxu0 %v242
  %401 = vmatprep.subr.mxu0 %v251
  %402 = vmatpush1.msra.mxu0 %v250
  %403 = vmatprep.subr.mxu0 %v259
  %404 = vmatpush1.msra.mxu0 %v258
  %405 = vmatprep.subr.mxu0 %v267
  %406 = vmatpush1.msra.mxu0 %v266
  %407 = vmatprep.mubr.f32.mxu0 %v15
  %408 = vmatmul.mubr.f32.gmra.mrb[0].mxu0 %v14
  %v409 = vpop.f32.mrb[0].mxu0
  %v410 = vadd.f32 0.0, %v409
  %v411 = vpop.f32.mrb[0].mxu0
  %v412 = vadd.f32 0.0, %v411
  %413 = vdwg.mxu0
  %414 = vmatprep.subr.mxu0 %v21
  %415 = vmatpush1.msra.mxu0 %v20
  %416 = vmatprep.subr.mxu0 %v29
  %417 = vmatpush1.msra.mxu0 %v28
  %418 = vmatprep.subr.mxu0 %v37
  %419 = vmatpush1.msra.mxu0 %v36
  %420 = vmatprep.subr.mxu0 %v45
  %421 = vmatpush1.msra.mxu0 %v44
  %422 = vmatprep.subr.mxu0 %v53
  %423 = vmatpush1.msra.mxu0 %v52
  %424 = vmatprep.subr.mxu0 %v61
  %425 = vmatpush1.msra.mxu0 %v60
  %426 = vmatprep.subr.mxu0 %v69
  %427 = vmatpush1.msra.mxu0 %v68
  %428 = vmatprep.subr.mxu0 %v77
  %429 = vmatpush1.msra.mxu0 %v76
  %430 = vmatprep.subr.mxu0 %v85
  %431 = vmatpush1.msra.mxu0 %v84
  %432 = vmatprep.subr.mxu0 %v93
  %433 = vmatpush1.msra.mxu0 %v92
  %434 = vmatprep.subr.mxu0 %v101
  %435 = vmatpush1.msra.mxu0 %v100
  %436 = vmatprep.subr.mxu0 %v109
  %437 = vmatpush1.msra.mxu0 %v108
  %438 = vmatprep.subr.mxu0 %v117
  %439 = vmatpush1.msra.mxu0 %v116
  %440 = vmatprep.subr.mxu0 %v125
  %441 = vmatpush1.msra.mxu0 %v124
  %442 = vmatprep.subr.mxu0 %v133
  %443 = vmatpush1.msra.mxu0 %v132
  %444 = vmatprep.subr.mxu0 %v141
  %445 = vmatpush1.msra.mxu0 %v140
  %446 = vmatprep.subr.mxu0 %v149
  %447 = vmatpush1.msra.mxu0 %v148
  %448 = vmatprep.subr.mxu0 %v157
  %449 = vmatpush1.msra.mxu0 %v156
  %450 = vmatprep.subr.mxu0 %v165
  %451 = vmatpush1.msra.mxu0 %v164
  %452 = vmatprep.subr.mxu0 %v173
  %453 = vmatpush1.msra.mxu0 %v172
  %454 = vmatprep.subr.mxu0 %v181
  %455 = vmatpush1.msra.mxu0 %v180
  %456 = vmatprep.subr.mxu0 %v189
  %457 = vmatpush1.msra.mxu0 %v188
  %458 = vmatprep.subr.mxu0 %v197
  %459 = vmatpush1.msra.mxu0 %v196
  %460 = vmatprep.subr.mxu0 %v205
  %461 = vmatpush1.msra.mxu0 %v204
  %462 = vmatprep.subr.mxu0 %v213
  %463 = vmatpush1.msra.mxu0 %v212
  %464 = vmatprep.subr.mxu0 %v221
  %465 = vmatpush1.msra.mxu0 %v220
  %466 = vmatprep.subr.mxu0 %v229
  %467 = vmatpush1.msra.mxu0 %v228
  %468 = vmatprep.subr.mxu0 %v237
  %469 = vmatpush1.msra.mxu0 %v236
  %470 = vmatprep.subr.mxu0 %v245
  %471 = vmatpush1.msra.mxu0 %v244
  %472 = vmatprep.subr.mxu0 %v253
  %473 = vmatpush1.msra.mxu0 %v252
  %474 = vmatprep.subr.mxu0 %v261
  %475 = vmatpush1.msra.mxu0 %v260
  %476 = vmatprep.subr.mxu0 %v269
  %477 = vmatpush1.msra.mxu0 %v268
  %478 = vmatprep.mubr.f32.mxu0 %v15
  %479 = vmatmul.mubr.f32.gmra.mrb[0].mxu0 %v14
  %v480 = vpop.f32.mrb[0].mxu0
  %v481 = vadd.f32 0.0, %v480
  %v482 = vpop.f32.mrb[0].mxu0
  %v483 = vadd.f32 0.0, %v482
  %484 = vdwg.mxu0
  %485 = vmatprep.subr.mxu0 %v23
  %486 = vmatpush1.msra.mxu0 %v22
  %487 = vmatprep.subr.mxu0 %v31
  %488 = vmatpush1.msra.mxu0 %v30
  %489 = vmatprep.subr.mxu0 %v39
  %490 = vmatpush1.msra.mxu0 %v38
  %491 = vmatprep.subr.mxu0 %v47
  %492 = vmatpush1.msra.mxu0 %v46
  %493 = vmatprep.subr.mxu0 %v55
  %494 = vmatpush1.msra.mxu0 %v54
  %495 = vmatprep.subr.mxu0 %v63
  %496 = vmatpush1.msra.mxu0 %v62
  %497 = vmatprep.subr.mxu0 %v71
  %498 = vmatpush1.msra.mxu0 %v70
  %499 = vmatprep.subr.mxu0 %v79
  %500 = vmatpush1.msra.mxu0 %v78
  %501 = vmatprep.subr.mxu0 %v87
  %502 = vmatpush1.msra.mxu0 %v86
  %503 = vmatprep.subr.mxu0 %v95
  %504 = vmatpush1.msra.mxu0 %v94
  %505 = vmatprep.subr.mxu0 %v103
  %506 = vmatpush1.msra.mxu0 %v102
  %507 = vmatprep.subr.mxu0 %v111
  %508 = vmatpush1.msra.mxu0 %v110
  %509 = vmatprep.subr.mxu0 %v119
  %510 = vmatpush1.msra.mxu0 %v118
  %511 = vmatprep.subr.mxu0 %v127
  %512 = vmatpush1.msra.mxu0 %v126
  %513 = vmatprep.subr.mxu0 %v135
  %514 = vmatpush1.msra.mxu0 %v134
  %515 = vmatprep.subr.mxu0 %v143
  %516 = vmatpush1.msra.mxu0 %v142
  %517 = vmatprep.subr.mxu0 %v151
  %518 = vmatpush1.msra.mxu0 %v150
  %519 = vmatprep.subr.mxu0 %v159
  %520 = vmatpush1.msra.mxu0 %v158
  %521 = vmatprep.subr.mxu0 %v167
  %522 = vmatpush1.msra.mxu0 %v166
  %523 = vmatprep.subr.mxu0 %v175
  %524 = vmatpush1.msra.mxu0 %v174
  %525 = vmatprep.subr.mxu0 %v183
  %526 = vmatpush1.msra.mxu0 %v182
  %527 = vmatprep.subr.mxu0 %v191
  %528 = vmatpush1.msra.mxu0 %v190
  %529 = vmatprep.subr.mxu0 %v199
  %530 = vmatpush1.msra.mxu0 %v198
  %531 = vmatprep.subr.mxu0 %v207
  %532 = vmatpush1.msra.mxu0 %v206
  %533 = vmatprep.subr.mxu0 %v215
  %534 = vmatpush1.msra.mxu0 %v214
  %535 = vmatprep.subr.mxu0 %v223
  %536 = vmatpush1.msra.mxu0 %v222
  %537 = vmatprep.subr.mxu0 %v231
  %538 = vmatpush1.msra.mxu0 %v230
  %539 = vmatprep.subr.mxu0 %v239
  %540 = vmatpush1.msra.mxu0 %v238
  %541 = vmatprep.subr.mxu0 %v247
  %542 = vmatpush1.msra.mxu0 %v246
  %543 = vmatprep.subr.mxu0 %v255
  %544 = vmatpush1.msra.mxu0 %v254
  %545 = vmatprep.subr.mxu0 %v263
  %546 = vmatpush1.msra.mxu0 %v262
  %547 = vmatprep.subr.mxu0 %v271
  %548 = vmatpush1.msra.mxu0 %v270
  %549 = vmatprep.mubr.f32.mxu0 %v15
  %550 = vmatmul.mubr.f32.gmra.mrb[0].mxu0 %v14
  %v551 = vpop.f32.mrb[0].mxu0
  %v552 = vadd.f32 0.0, %v551
  %v553 = vpop.f32.mrb[0].mxu0
  %v554 = vadd.f32 0.0, %v553
  %555 = vdwg.mxu0
  %v556 = vmax.f32 %v339, %v481
  %v557 = vmax.f32 %v341, %v483
  %v558 = vmax.f32 %v410, %v552
  %v559 = vmax.f32 %v412, %v554
  %v560 = vmin.f32 %v339, %v481
  %v561 = vmin.f32 %v341, %v483
  %v562 = vmin.f32 %v410, %v552
  %v563 = vmin.f32 %v412, %v554
  %v564 = vmax.f32 %v556, %v558
  %v565 = vmax.f32 %v557, %v559
  %v566 = vmin.f32 %v560, %v562
  %v567 = vmin.f32 %v561, %v563
  %v568 = vmax.f32 %v564, %v565
  %v569 = vmin.f32 %v566, %v567
  %571 = vrot.lane.b32.xlu0 %v568, 64
  %v572 = vpop.permute.xlu0 %571
  %v574 = vmax.f32 %v568, %v572
  %576 = vrot.lane.b32.xlu0 %v569, 64
  %v577 = vpop.permute.xlu0 %576
  %v579 = vmin.f32 %v569, %v577
  %581 = vrot.lane.b32.xlu0 %v574, 96
  %v582 = vpop.permute.xlu0 %581
  %v584 = vmax.f32 %v574, %v582
  %586 = vrot.lane.b32.xlu0 %v579, 96
  %v587 = vpop.permute.xlu0 %586
  %v589 = vmin.f32 %v579, %v587
  %591 = vrot.lane.b32.xlu0 %v584, 112
  %v592 = vpop.permute.xlu0 %591
  %v594 = vmax.f32 %v584, %v592
  %596 = vrot.lane.b32.xlu0 %v589, 112
  %v597 = vpop.permute.xlu0 %596
  %v599 = vmin.f32 %v589, %v597
  %601 = vrot.lane.b32.xlu0 %v594, 120
  %v602 = vpop.permute.xlu0 %601
  %v604 = vmax.f32 %v594, %v602
  %606 = vrot.lane.b32.xlu0 %v599, 120
  %v607 = vpop.permute.xlu0 %606
  %v609 = vmin.f32 %v599, %v607
  %611 = vrot.lane.b32.xlu0 %v609, 8
  %v612 = vpop.permute.xlu0 %611
  %vm614 = vcmask 64512
  %v615 = vsel %vm614, %v604, %v612
  %v616 = vld [vmem:[%s2 + $0x68] sm:$0x1]
  %v617 = vlaneseq
  %v618 = vshrl.u32 %v617, 7
  %v619 = vsub.s32 0, %v618
  %v620 = vrot.slane %v616, %v619
  %v621 = vadd.f32 %v615, %v620
  %v622 = vld [vmem:[%s2] sm:$0xff]
  %v623 = vld [vmem:[%s2 + $0x8] sm:$0xff]
  %v624 = vld [vmem:[%s2 + $0x10] sm:$0x1]
  %v625 = vlaneseq
  %v626 = vshrl.u32 %v625, 7
  %v627 = vsub.s32 0, %v626
  %v628 = vrot.slane %v624, %v627
  %vm629 = vcmask 130048
  %v631 = vsel %vm629, %v621, 0
  %633 = vmatprep.subr.mxu0 0.0
  %634 = vmatpush1.msra.mxu0 %v622
  %635 = vmatprep.subr.mxu0 0.0
  %636 = vmatpush1.msra.mxu0 %v623
  %637 = vmatprep.subr.mxu0 0.0
  %638 = vmatpush1.msra.mxu0 0.0
  %639 = vmatprep.subr.mxu0 0.0
  %640 = vmatpush1.msra.mxu0 0.0
  %641 = vmatprep.subr.mxu0 0.0
  %642 = vmatpush1.msra.mxu0 0.0
  %643 = vmatprep.subr.mxu0 0.0
  %644 = vmatpush1.msra.mxu0 0.0
  %645 = vmatprep.subr.mxu0 0.0
  %646 = vmatpush1.msra.mxu0 0.0
  %647 = vmatprep.subr.mxu0 0.0
  %648 = vmatpush1.msra.mxu0 0.0
  %649 = vmatprep.subr.mxu0 0.0
  %650 = vmatpush1.msra.mxu0 0.0
  %651 = vmatprep.subr.mxu0 0.0
  %652 = vmatpush1.msra.mxu0 0.0
  %653 = vmatprep.subr.mxu0 0.0
  %654 = vmatpush1.msra.mxu0 0.0
  %655 = vmatprep.subr.mxu0 0.0
  %656 = vmatpush1.msra.mxu0 0.0
  %657 = vmatprep.subr.mxu0 0.0
  %658 = vmatpush1.msra.mxu0 0.0
  %659 = vmatprep.subr.mxu0 0.0
  %660 = vmatpush1.msra.mxu0 0.0
  %661 = vmatprep.subr.mxu0 0.0
  %662 = vmatpush1.msra.mxu0 0.0
  %663 = vmatprep.subr.mxu0 0.0
  %664 = vmatpush1.msra.mxu0 0.0
  %665 = vmatprep.subr.mxu0 0.0
  %666 = vmatpush1.msra.mxu0 0.0
  %667 = vmatprep.subr.mxu0 0.0
  %668 = vmatpush1.msra.mxu0 0.0
  %669 = vmatprep.subr.mxu0 0.0
  %670 = vmatpush1.msra.mxu0 0.0
  %671 = vmatprep.subr.mxu0 0.0
  %672 = vmatpush1.msra.mxu0 0.0
  %673 = vmatprep.subr.mxu0 0.0
  %674 = vmatpush1.msra.mxu0 0.0
  %675 = vmatprep.subr.mxu0 0.0
  %676 = vmatpush1.msra.mxu0 0.0
  %677 = vmatprep.subr.mxu0 0.0
  %678 = vmatpush1.msra.mxu0 0.0
  %679 = vmatprep.subr.mxu0 0.0
  %680 = vmatpush1.msra.mxu0 0.0
  %681 = vmatprep.subr.mxu0 0.0
  %682 = vmatpush1.msra.mxu0 0.0
  %683 = vmatprep.subr.mxu0 0.0
  %684 = vmatpush1.msra.mxu0 0.0
  %685 = vmatprep.subr.mxu0 0.0
  %686 = vmatpush1.msra.mxu0 0.0
  %687 = vmatprep.subr.mxu0 0.0
  %688 = vmatpush1.msra.mxu0 0.0
  %689 = vmatprep.subr.mxu0 0.0
  %690 = vmatpush1.msra.mxu0 0.0
  %691 = vmatprep.subr.mxu0 0.0
  %692 = vmatpush1.msra.mxu0 0.0
  %693 = vmatprep.subr.mxu0 0.0
  %694 = vmatpush1.msra.mxu0 0.0
  %695 = vmatprep.subr.mxu0 0.0
  %696 = vmatpush1.msra.mxu0 0.0
  %697 = vmatprep.mubr.f32.mxu0 0.0
  %698 = vmatmul.mubr.f32.gmra.mrb[0].mxu0 %v631
  %v699 = vpop.f32.mrb[0].mxu0
  %v700 = vadd.f32 %v628, %v699
  %v701 = vpop.f32.mrb[0].mxu0
  %702 = vdwg.mxu0
  %v703 = vmax.f32 %v700, 0.0
  %v704 = vld [vmem:[%s2 + $0x18] sm:$0xff]
  %v705 = vld [vmem:[%s2 + $0x20] sm:$0xff]
  %v706 = vld [vmem:[%s2 + $0x28] sm:$0xff]
  %v707 = vld [vmem:[%s2 + $0x30] sm:$0xff]
  %v708 = vld [vmem:[%s2 + $0x38] sm:$0x1]
  %v709 = vlaneseq
  %v710 = vshrl.u32 %v709, 7
  %v711 = vsub.s32 0, %v710
  %v712 = vrot.slane %v708, %v711
  %vm713 = vcmask 261120
  %v715 = vsel %vm713, %v703, 0
  %717 = vmatprep.subr.mxu0 0.0
  %718 = vmatpush1.msra.mxu0 %v704
  %719 = vmatprep.subr.mxu0 0.0
  %720 = vmatpush1.msra.mxu0 %v705
  %721 = vmatprep.subr.mxu0 0.0
  %722 = vmatpush1.msra.mxu0 %v706
  %723 = vmatprep.subr.mxu0 0.0
  %724 = vmatpush1.msra.mxu0 %v707
  %725 = vmatprep.subr.mxu0 0.0
  %726 = vmatpush1.msra.mxu0 0.0
  %727 = vmatprep.subr.mxu0 0.0
  %728 = vmatpush1.msra.mxu0 0.0
  %729 = vmatprep.subr.mxu0 0.0
  %730 = vmatpush1.msra.mxu0 0.0
  %731 = vmatprep.subr.mxu0 0.0
  %732 = vmatpush1.msra.mxu0 0.0
  %733 = vmatprep.subr.mxu0 0.0
  %734 = vmatpush1.msra.mxu0 0.0
  %735 = vmatprep.subr.mxu0 0.0
  %736 = vmatpush1.msra.mxu0 0.0
  %737 = vmatprep.subr.mxu0 0.0
  %738 = vmatpush1.msra.mxu0 0.0
  %739 = vmatprep.subr.mxu0 0.0
  %740 = vmatpush1.msra.mxu0 0.0
  %741 = vmatprep.subr.mxu0 0.0
  %742 = vmatpush1.msra.mxu0 0.0
  %743 = vmatprep.subr.mxu0 0.0
  %744 = vmatpush1.msra.mxu0 0.0
  %745 = vmatprep.subr.mxu0 0.0
  %746 = vmatpush1.msra.mxu0 0.0
  %747 = vmatprep.subr.mxu0 0.0
  %748 = vmatpush1.msra.mxu0 0.0
  %749 = vmatprep.subr.mxu0 0.0
  %750 = vmatpush1.msra.mxu0 0.0
  %751 = vmatprep.subr.mxu0 0.0
  %752 = vmatpush1.msra.mxu0 0.0
  %753 = vmatprep.subr.mxu0 0.0
  %754 = vmatpush1.msra.mxu0 0.0
  %755 = vmatprep.subr.mxu0 0.0
  %756 = vmatpush1.msra.mxu0 0.0
  %757 = vmatprep.subr.mxu0 0.0
  %758 = vmatpush1.msra.mxu0 0.0
  %759 = vmatprep.subr.mxu0 0.0
  %760 = vmatpush1.msra.mxu0 0.0
  %761 = vmatprep.subr.mxu0 0.0
  %762 = vmatpush1.msra.mxu0 0.0
  %763 = vmatprep.subr.mxu0 0.0
  %764 = vmatpush1.msra.mxu0 0.0
  %765 = vmatprep.subr.mxu0 0.0
  %766 = vmatpush1.msra.mxu0 0.0
  %767 = vmatprep.subr.mxu0 0.0
  %768 = vmatpush1.msra.mxu0 0.0
  %769 = vmatprep.subr.mxu0 0.0
  %770 = vmatpush1.msra.mxu0 0.0
  %771 = vmatprep.subr.mxu0 0.0
  %772 = vmatpush1.msra.mxu0 0.0
  %773 = vmatprep.subr.mxu0 0.0
  %774 = vmatpush1.msra.mxu0 0.0
  %775 = vmatprep.subr.mxu0 0.0
  %776 = vmatpush1.msra.mxu0 0.0
  %777 = vmatprep.subr.mxu0 0.0
  %778 = vmatpush1.msra.mxu0 0.0
  %779 = vmatprep.subr.mxu0 0.0
  %780 = vmatpush1.msra.mxu0 0.0
  %781 = vmatprep.mubr.f32.mxu0 0.0
  %782 = vmatmul.mubr.f32.gmra.mrb[0].mxu0 %v715
  %v783 = vpop.f32.mrb[0].mxu0
  %v784 = vadd.f32 %v712, %v783
  %v785 = vpop.f32.mrb[0].mxu0
  %786 = vdwg.mxu0
  %v787 = vmax.f32 %v784, 0.0
  %v788 = vld [vmem:[%s2 + $0x40] sm:$0xff]
  %v789 = vld [vmem:[%s2 + $0x48] sm:$0xff]
  %v790 = vld [vmem:[%s2 + $0x50] sm:$0xff]
  %v791 = vld [vmem:[%s2 + $0x58] sm:$0xff]
  %v792 = vld [vmem:[%s2 + $0x60] sm:$0x1]
  %v793 = vlaneseq
  %v794 = vshrl.u32 %v793, 7
  %v795 = vsub.s32 0, %v794
  %v796 = vrot.slane %v792, %v795
  %v798 = vsel %vm713, %v787, 0
  %800 = vmatprep.subr.mxu0 0.0
  %801 = vmatpush1.msra.mxu0 %v788
  %802 = vmatprep.subr.mxu0 0.0
  %803 = vmatpush1.msra.mxu0 %v789
  %804 = vmatprep.subr.mxu0 0.0
  %805 = vmatpush1.msra.mxu0 %v790
  %806 = vmatprep.subr.mxu0 0.0
  %807 = vmatpush1.msra.mxu0 %v791
  %808 = vmatprep.subr.mxu0 0.0
  %809 = vmatpush1.msra.mxu0 0.0
  %810 = vmatprep.subr.mxu0 0.0
  %811 = vmatpush1.msra.mxu0 0.0
  %812 = vmatprep.subr.mxu0 0.0
  %813 = vmatpush1.msra.mxu0 0.0
  %814 = vmatprep.subr.mxu0 0.0
  %815 = vmatpush1.msra.mxu0 0.0
  %816 = vmatprep.subr.mxu0 0.0
  %817 = vmatpush1.msra.mxu0 0.0
  %818 = vmatprep.subr.mxu0 0.0
  %819 = vmatpush1.msra.mxu0 0.0
  %820 = vmatprep.subr.mxu0 0.0
  %821 = vmatpush1.msra.mxu0 0.0
  %822 = vmatprep.subr.mxu0 0.0
  %823 = vmatpush1.msra.mxu0 0.0
  %824 = vmatprep.subr.mxu0 0.0
  %825 = vmatpush1.msra.mxu0 0.0
  %826 = vmatprep.subr.mxu0 0.0
  %827 = vmatpush1.msra.mxu0 0.0
  %828 = vmatprep.subr.mxu0 0.0
  %829 = vmatpush1.msra.mxu0 0.0
  %830 = vmatprep.subr.mxu0 0.0
  %831 = vmatpush1.msra.mxu0 0.0
  %832 = vmatprep.subr.mxu0 0.0
  %833 = vmatpush1.msra.mxu0 0.0
  %834 = vmatprep.subr.mxu0 0.0
  %835 = vmatpush1.msra.mxu0 0.0
  %836 = vmatprep.subr.mxu0 0.0
  %837 = vmatpush1.msra.mxu0 0.0
  %838 = vmatprep.subr.mxu0 0.0
  %839 = vmatpush1.msra.mxu0 0.0
  %840 = vmatprep.subr.mxu0 0.0
  %841 = vmatpush1.msra.mxu0 0.0
  %842 = vmatprep.subr.mxu0 0.0
  %843 = vmatpush1.msra.mxu0 0.0
  %844 = vmatprep.subr.mxu0 0.0
  %845 = vmatpush1.msra.mxu0 0.0
  %846 = vmatprep.subr.mxu0 0.0
  %847 = vmatpush1.msra.mxu0 0.0
  %848 = vmatprep.subr.mxu0 0.0
  %849 = vmatpush1.msra.mxu0 0.0
  %850 = vmatprep.subr.mxu0 0.0
  %851 = vmatpush1.msra.mxu0 0.0
  %852 = vmatprep.subr.mxu0 0.0
  %853 = vmatpush1.msra.mxu0 0.0
  %854 = vmatprep.subr.mxu0 0.0
  %855 = vmatpush1.msra.mxu0 0.0
  %856 = vmatprep.subr.mxu0 0.0
  %857 = vmatpush1.msra.mxu0 0.0
  %858 = vmatprep.subr.mxu0 0.0
  %859 = vmatpush1.msra.mxu0 0.0
  %860 = vmatprep.subr.mxu0 0.0
  %861 = vmatpush1.msra.mxu0 0.0
  %862 = vmatprep.subr.mxu0 0.0
  %863 = vmatpush1.msra.mxu0 0.0
  %864 = vmatprep.mubr.f32.mxu0 0.0
  %865 = vmatmul.mubr.f32.gmra.mrb[0].mxu0 %v798
  %v866 = vpop.f32.mrb[0].mxu0
  %v867 = vadd.f32 %v796, %v866
  %v868 = vpop.f32.mrb[0].mxu0
  %869 = vdwg.mxu0
  %870 = vst [vmem:[%s3] sm:$0xff] %v867
  // Predicated region
  $region14: #{cnniqa_forward.1} parent=0 // pred_check
    _
  $region15: #{cnniqa_forward.1} parent=0 // pred_check_branch
    %872 = sbr.rel (0) target = $region17
  $region16: #{cnniqa_forward.1} parent=0 // pred_region
    _
  $region17: #{cnniqa_forward.1} parent=0 // pred_fallthru
    _
  // Predicated region
  $region18: #{cnniqa_forward.1} parent=0 // pred_check
    _
  $region19: #{cnniqa_forward.1} parent=0 // pred_check_branch
    %874 = sbr.rel (0) target = $region21
  $region20: #{cnniqa_forward.1} parent=0 // pred_region
    _
  $region21: #{cnniqa_forward.1} parent=0 // pred_fallthru
    _

</llo_original>
